<compile_context>
chip_gen: v7x
topology: tpu7x:2x2x1
jax: 0.10.0
libtpu: 0.0.40
codegen_flags: <defaults>
</compile_context>

<pallas_src>
import math
import numpy as np

import jax
import jax.numpy as jnp
from jax.experimental import pallas as pl
from jax.experimental.pallas import tpu as pltpu


# ----------------------------------------------------------------------------
# Host-side glue: theta (mirrors the PyTorch forward's numpy code exactly)
# ----------------------------------------------------------------------------
def make_theta(N, width, height, scale, ratio, seed=0):
    """Reproduces the numpy/theta logic of RandomResizeCropLayer.forward."""
    np.random.seed(seed)
    theta = np.tile(np.eye(2, 3, dtype=np.float32), (N, 1, 1))  # _eye.repeat(N,1,1)

    area = height * width
    target_area = np.random.uniform(scale[0], scale[1], N * 10) * area
    log_ratio = (math.log(ratio[0]), math.log(ratio[1]))
    aspect_ratio = np.exp(np.random.uniform(log_ratio[0], log_ratio[1], N * 10))

    w = np.round(np.sqrt(target_area * aspect_ratio))
    h = np.round(np.sqrt(target_area / aspect_ratio))
    cond = (0 < w) * (w <= width) * (0 < h) * (h <= height)
    w = w[cond]
    h = h[cond]
    if len(w) > N:
        inds = np.random.choice(len(w), N, replace=False)
        w = w[inds]
        h = h[inds]
    transform_len = len(w)

    r_w_bias = np.random.randint(w - width, width - w + 1) / width
    r_h_bias = np.random.randint(h - height, height - h + 1) / height
    w = w / width
    h = h / height

    theta[:transform_len, 0, 0] = w.astype(np.float32)
    theta[:transform_len, 1, 1] = h.astype(np.float32)
    theta[:transform_len, 0, 2] = r_w_bias.astype(np.float32)
    theta[:transform_len, 1, 2] = r_h_bias.astype(np.float32)
    return jnp.asarray(theta)


# ----------------------------------------------------------------------------
# Glue: separable bilinear interpolation matrices from theta.
# Exact semantics of affine_grid + grid_sample (bilinear, reflection padding,
# align_corners=False).
# ----------------------------------------------------------------------------
def _axis_interp_matrix(scale, bias, size, transpose=False):
    """scale, bias: (N,).  Returns (N, size, size) interpolation matrix
    (or its transpose if `transpose=True`, so the kernel never transposes)."""
    size_f = float(size)
    # affine_grid base coords, align_corners=False
    pos = (2.0 * jnp.arange(size, dtype=jnp.float32) + 1.0) / size_f - 1.0  # (size,)
    g = scale[:, None] * pos[None, :] + bias[:, None]                       # (N, size)
    # grid_sample unnormalize, align_corners=False
    coord = ((g + 1.0) * size_f - 1.0) / 2.0
    # reflection padding, align_corners=False: reflect about [-0.5, size-0.5]
    minv = -0.5
    span = size_f
    a = jnp.abs(coord - minv)
    extra = jnp.mod(a, span)
    flips = jnp.floor(a / span)
    refl = jnp.where(jnp.mod(flips, 2.0) == 0.0, extra + minv, span - extra + minv)
    # clip_coordinates
    refl = jnp.clip(refl, 0.0, size_f - 1.0)
    idx0 = jnp.floor(refl)
    frac = refl - idx0
    i0 = idx0.astype(jnp.int32)
    i1 = i0 + 1
    oh0 = jax.nn.one_hot(i0, size, dtype=jnp.float32)  # (N, size, size)
    oh1 = jax.nn.one_hot(i1, size, dtype=jnp.float32)  # zero row iff i1==size (frac==0 there)
    mat = oh0 * (1.0 - frac)[..., None] + oh1 * frac[..., None]
    if transpose:
        mat = jnp.swapaxes(mat, 1, 2)
    return mat


def make_interp_matrices(theta, H, W):
    # grid x-channel (last spatial dim W): theta[:,0,0]*x + theta[:,0,2]
    # grid y-channel (dim H):              theta[:,1,1]*y + theta[:,1,2]
    # (off-diagonal theta entries are always zero for this module)
    wy = _axis_interp_matrix(theta[:, 1, 1], theta[:, 1, 2], H)                    # (N, H, H)
    wxT = _axis_interp_matrix(theta[:, 0, 0], theta[:, 0, 2], W, transpose=True)   # (N, W, W) = Wx^T
    return wy, wxT


# ----------------------------------------------------------------------------
# Pallas kernel: per-block separable resampling.
#   x_ref   : (nb,   C*H, W) bf16   -- NCHW block with C and H merged (free reshape)
#   wyr_ref : (nb*C, H,   H) bf16   -- row-interp matrix, repeated per channel
#   wxt_ref : (nb,   W,   W) bf16   -- column-interp matrix, pre-transposed
#   o_ref   : (nb,   C*H, W) out dtype
# ----------------------------------------------------------------------------
def _resample_kernel(x_ref, wyr_ref, wxt_ref, o_ref):
    nb, CH, W = x_ref.shape
    B, H, _ = wyr_ref.shape          # B == nb * C

    x = x_ref[...]                   # (nb, C*H, W)   bf16
    wxt = wxt_ref[...]               # (nb, W, W)     bf16 (already Wx^T)

    # Stage 1: column resample, channel-folded (M = C*H per batch item):
    #   y[n] = x[n] @ Wx[n]^T
    y = jax.lax.dot_general(
        x, wxt, (((2,), (1,)), ((0,), (0,))),
        preferred_element_type=jnp.float32)               # (nb, C*H, W) f32

    # Stage 2: row resample, batched over (batch*channel):
    #   out[b] = Wy[b] @ y[b]
    # The reshape only splits/merges leading dims on sublane-tile boundaries
    # (H multiple of 8/16), so it is a relabeling, not a relayout.
    y = y.astype(jnp.bfloat16).reshape(B, H, W)            # (nb*C, H, W)
    out = jax.lax.dot_general(
        wyr_ref[...], y, (((2,), (1,)), ((0,), (0,))),
        preferred_element_type=jnp.float32)                # (nb*C, H, W) f32

    # Single whole-block store (no per-channel partial stores).
    o_ref[...] = out.reshape(nb, CH, W).astype(o_ref.dtype)


def random_resize_crop_pallas(x, wy, wxT, *, nb_target=8):
    N, C, H, W = x.shape
    CH = C * H
    out_dtype = x.dtype

    # Wrapper-side layout plumbing (free): NCHW -> (N, C*H, W), bf16 MXU inputs.
    x_bf = x.reshape(N, CH, W).astype(jnp.bfloat16)
    wy_bf = wy.astype(jnp.bfloat16)
    wxT_bf = wxT.astype(jnp.bfloat16)
    # Row-interp matrix repeated per channel so stage 2 is one batched matmul
    # over (batch*channel).  (For very large H, broadcast in-kernel instead to
    # avoid the C x HBM traffic on Wy; at these sizes it is negligible.)
    wy_rep = jnp.repeat(wy_bf, C, axis=0)                  # (N*C, H, H)

    # Batch blocking: largest divisor of N that fits the per-block VMEM budget.
    itemsize_out = jnp.dtype(out_dtype).itemsize
    per_item = CH * W * (2 + itemsize_out) + C * H * H * 2 + W * W * 2
    budget = 4 * 1024 * 1024                               # per single-buffered block
    cap = max(1, min(nb_target, budget // max(per_item, 1)))
    nb = 1
    for d in range(int(min(N, cap)), 0, -1):
        if N % d == 0:
            nb = d
            break
    block_bytes = nb * per_item
    # Explicit scoped-VMEM limit (covers double-buffered in/out + matrices,
    # with headroom); floor below v7x physical, above v5e scoped default.
    vmem_limit = int(min(48 * 1024 * 1024, max(32 * 1024 * 1024, 8 * block_bytes)))

    out = pl.pallas_call(
        _resample_kernel,
        out_shape=jax.ShapeDtypeStruct((N, CH, W), out_dtype),
        grid=(N // nb,),
        in_specs=[
            pl.BlockSpec((nb, CH, W), lambda i: (i, 0, 0)),
            pl.BlockSpec((nb * C, H, H), lambda i: (i, 0, 0)),
            pl.BlockSpec((nb, W, W), lambda i: (i, 0, 0)),
        ],
        out_specs=pl.BlockSpec((nb, CH, W), lambda i: (i, 0, 0)),
        compiler_params=pltpu.CompilerParams(
            dimension_semantics=("parallel",),   # batch blocks are independent
            vmem_limit_bytes=vmem_limit),
    )(x_bf, wy_rep, wxT_bf)
    return out.reshape(N, C, H, W)


# ----------------------------------------------------------------------------
# Module-equivalent wrapper
# ----------------------------------------------------------------------------
def random_resize_crop_forward(inputs, scale=(0.08, 1.0),
                               ratio=(3.0 / 4.0, 4.0 / 3.0), seed=0):
    # NOTE: the PyTorch module unpacks `N, _, width, height = inputs.shape`
    # (i.e. width=shape[2], height=shape[3], swapped names).  We mirror that
    # exactly; the swap only affects the random crop-geometry draw, while the
    # interp matrices below use the true H=shape[2], W=shape[3].
    N, _, width, height = inputs.shape
    H, W = inputs.shape[2], inputs.shape[3]
    theta = make_theta(N, width, height, scale, ratio, seed=seed)
    wy, wxT = make_interp_matrices(theta, H, W)
    return random_resize_crop_pallas(inputs, wy, wxT)


if __name__ == "__main__":
    key = jax.random.PRNGKey(0)
    N, C, H, W = 2, 4, 16, 16
    x = jax.random.normal(key, (N, C, H, W), dtype=jnp.float32)

    out = random_resize_crop_forward(x)
    out = jax.block_until_ready(out)
    assert out.shape == (N, C, H, W) and out.dtype == jnp.float32

    # Sanity: Pallas kernel vs plain-JAX einsum of the same resampling.
    # Kernel runs the matmuls in bf16 (f32 accumulation) -> loosened tolerance.
    theta = make_theta(N, H, W, (0.08, 1.0), (3.0 / 4.0, 4.0 / 3.0), seed=0)
    wy, wxT = make_interp_matrices(theta, H, W)
    ref = jnp.einsum("nih,nchw,nwj->ncij", wy, x, wxT)
    err = float(jnp.max(jnp.abs(out - ref)))
    assert jnp.allclose(out, ref, atol=5e-2, rtol=5e-2), err

    print("KERNEL_OK")
</pallas_src>

<mosaic_0001>
module attributes {stable_mosaic.version = 11 : i64} {
  func.func @_resample_kernel(%arg0: i32, %arg1: memref<2x64x16xbf16, #tpu.memory_space<vmem>>, %arg2: memref<8x16x16xbf16, #tpu.memory_space<vmem>>, %arg3: memref<2x16x16xbf16, #tpu.memory_space<vmem>>, %arg4: memref<2x64x16xf32, #tpu.memory_space<vmem>>) attributes {dimension_semantics = [#tpu.dimension_semantics<parallel>], iteration_bounds = array<i64: 1>, scalar_prefetch = 0 : i64, scratch_operands = 0 : i64, tpu.core_type = #tpu.core_type<tc>, window_params = [{transform_indices = @transform_0, window_bounds = array<i64: 2, 64, 16>}, {transform_indices = @transform_1, window_bounds = array<i64: 8, 16, 16>}, {transform_indices = @transform_2, window_bounds = array<i64: 2, 16, 16>}, {transform_indices = @transform_3, window_bounds = array<i64: 2, 64, 16>}]} {
    %c0 = arith.constant 0 : index
    %c0_0 = arith.constant 0 : index
    %c0_1 = arith.constant 0 : index
    %0 = vector.load %arg1[%c0, %c0_0, %c0_1] : memref<2x64x16xbf16, #tpu.memory_space<vmem>>, vector<2x64x16xbf16>
    %c0_2 = arith.constant 0 : index
    %c0_3 = arith.constant 0 : index
    %c0_4 = arith.constant 0 : index
    %1 = vector.load %arg3[%c0_2, %c0_3, %c0_4] : memref<2x16x16xbf16, #tpu.memory_space<vmem>>, vector<2x16x16xbf16>
    %cst = arith.constant dense<0.000000e+00> : vector<2x64x16xf32>
    %2 = tpu.matmul %0, %1, %cst {dimension_numbers = #tpu.dot_dimension_numbers<[2], [1], [1], [2], [0, 0, 0, 1, 1, 2], [0], [0]>} : vector<2x64x16xbf16>, vector<2x16x16xbf16>, vector<2x64x16xf32> -> vector<2x64x16xf32>
    %3 = arith.truncf %2 : vector<2x64x16xf32> to vector<2x64x16xbf16>
    %4 = vector.shape_cast %3 : vector<2x64x16xbf16> to vector<8x16x16xbf16>
    %c0_5 = arith.constant 0 : index
    %c0_6 = arith.constant 0 : index
    %c0_7 = arith.constant 0 : index
    %5 = vector.load %arg2[%c0_5, %c0_6, %c0_7] : memref<8x16x16xbf16, #tpu.memory_space<vmem>>, vector<8x16x16xbf16>
    %cst_8 = arith.constant dense<0.000000e+00> : vector<8x16x16xf32>
    %6 = tpu.matmul %5, %4, %cst_8 {dimension_numbers = #tpu.dot_dimension_numbers<[2], [1], [1], [2], [0, 0, 0, 1, 1, 2], [0], [0]>} : vector<8x16x16xbf16>, vector<8x16x16xbf16>, vector<8x16x16xf32> -> vector<8x16x16xf32>
    %7 = vector.shape_cast %6 : vector<8x16x16xf32> to vector<2x64x16xf32>
    %c0_9 = arith.constant 0 : index
    %c0_10 = arith.constant 0 : index
    %c0_11 = arith.constant 0 : index
    %8 = vector.load %arg4[%c0_9, %c0_10, %c0_11] : memref<2x64x16xf32, #tpu.memory_space<vmem>>, vector<2x64x16xf32>
    tpu.vector_store %arg4[%c0_9, %c0_10, %c0_11], %7 {strides = array<i32>} : memref<2x64x16xf32, #tpu.memory_space<vmem>>, vector<2x64x16xf32>,
    return
  }
  func.func @transform_0(%arg0: i32) -> (i32, i32, i32) {
    %c0_i32 = arith.constant 0 : i32
    %c0_i32_0 = arith.constant 0 : i32
    %c0_i32_1 = arith.constant 0 : i32
    return %arg0, %c0_i32, %c0_i32_0 : i32, i32, i32
  }
  func.func @transform_1(%arg0: i32) -> (i32, i32, i32) {
    %c0_i32 = arith.constant 0 : i32
    %c0_i32_0 = arith.constant 0 : i32
    %c0_i32_1 = arith.constant 0 : i32
    return %arg0, %c0_i32, %c0_i32_0 : i32, i32, i32
  }
  func.func @transform_2(%arg0: i32) -> (i32, i32, i32) {
    %c0_i32 = arith.constant 0 : i32
    %c0_i32_0 = arith.constant 0 : i32
    %c0_i32_1 = arith.constant 0 : i32
    return %arg0, %c0_i32, %c0_i32_0 : i32, i32, i32
  }
  func.func @transform_3(%arg0: i32) -> (i32, i32, i32) {
    %c0_i32 = arith.constant 0 : i32
    %c0_i32_0 = arith.constant 0 : i32
    %c0_i32_1 = arith.constant 0 : i32
    return %arg0, %c0_i32, %c0_i32_0 : i32, i32, i32
  }
}

</mosaic_0001>

<llo_original>
// kernel: tpu_custom_call.1
$region0: #{tpu_custom_call.1}
  #allocation0 [shape = 'u32[]', space=smem, size = 0x4, offset = 0x4, fixed_abs, tag = 'smem constant byte address 0x4 - core index']
  #allocation1 [shape = 'u32[144,128]{1,0:T(1,128)}', space=vmem, size = 0x12000, scoped, tag = 'internal scratch']
  %s0 = inlined_call_operand.vmem [shape: bf16[2,64,16], index: 0, kind: input, shape index: {}]
  %s1 = inlined_call_operand.vmem [shape: bf16[8,16,16], index: 1, kind: input, shape index: {}]
  %s2 = inlined_call_operand.vmem [shape: bf16[2,16,16], index: 2, kind: input, shape index: {}]
  %s3 = inlined_call_operand.vmem [shape: f32[2,64,16], index: 3, kind: output, shape index: {}]
  %s4 = sld [smem:[#allocation0]]
  $region22: #{tpu_custom_call.1} parent=0
    _
  %s6 = ssub.s32 1, %s4
  %s7 = scalar_select 0, %s6, %s4
  // Predicated region
  $region2: #{tpu_custom_call.1} parent=0 // pred_check
    _
  $region3: #{tpu_custom_call.1} parent=0 // pred_check_branch
    %9 = sbr.rel (0) target = $region5
  $region4: #{tpu_custom_call.1} parent=0 // pred_region
    _
  $region5: #{tpu_custom_call.1} parent=0 // pred_fallthru
    _
  // Predicated region
  $region6: #{tpu_custom_call.1} parent=0 // pred_check
    _
  $region7: #{tpu_custom_call.1} parent=0 // pred_check_branch
    %11 = sbr.rel (0) target = $region9
  $region8: #{tpu_custom_call.1} parent=0 // pred_region
    _
  $region9: #{tpu_custom_call.1} parent=0 // pred_fallthru
    _
  // Predicated region
  $region10: #{tpu_custom_call.1} parent=0 // pred_check
    _
  $region11: #{tpu_custom_call.1} parent=0 // pred_check_branch
    %13 = sbr.rel (0) target = $region13
  $region12: #{tpu_custom_call.1} parent=0 // pred_region
    _
  $region13: #{tpu_custom_call.1} parent=0 // pred_fallthru
    _
  %v15 = vld [vmem:[%s0] sm:$0xf]
  %v16 = vld [vmem:[%s0 + $0x4] sm:$0xf]
  %v17 = vld [vmem:[%s0 + $0x8] sm:$0xf]
  %v18 = vld [vmem:[%s0 + $0xc] sm:$0xf]
  %v19 = vld [vmem:[%s0 + $0x10] sm:$0xf]
  %v20 = vld [vmem:[%s0 + $0x14] sm:$0xf]
  %v21 = vld [vmem:[%s0 + $0x18] sm:$0xf]
  %v22 = vld [vmem:[%s0 + $0x1c] sm:$0xf]
  %v23 = vld [vmem:[%s0 + $0x20] sm:$0xf]
  %v24 = vld [vmem:[%s0 + $0x24] sm:$0xf]
  %v25 = vld [vmem:[%s0 + $0x28] sm:$0xf]
  %v26 = vld [vmem:[%s0 + $0x2c] sm:$0xf]
  %v27 = vld [vmem:[%s0 + $0x30] sm:$0xf]
  %v28 = vld [vmem:[%s0 + $0x34] sm:$0xf]
  %v29 = vld [vmem:[%s0 + $0x38] sm:$0xf]
  %v30 = vld [vmem:[%s0 + $0x3c] sm:$0xf]
  %v31 = vld [vmem:[%s2] sm:$0xf]
  %v32 = vld [vmem:[%s2 + $0x4] sm:$0xf]
  %v33 = vld [vmem:[%s2 + $0x8] sm:$0xf]
  %v34 = vld [vmem:[%s2 + $0xc] sm:$0xf]
  %v43 = vunpack.c.l.b16 %v15
  %v44 = vunpack.c.l.b16 %v16
  %v45 = vunpack.c.l.b16 %v17
  %v46 = vunpack.c.l.b16 %v18
  %v47 = vunpack.c.l.b16 %v19
  %v48 = vunpack.c.l.b16 %v20
  %v49 = vunpack.c.l.b16 %v21
  %v50 = vunpack.c.l.b16 %v22
  %v51 = vpack.c.b16 %v44, %v43
  %v52 = vpack.c.b16 %v46, %v45
  %v53 = vpack.c.b16 %v48, %v47
  %v54 = vpack.c.b16 %v50, %v49
  %v57 = vunpack.c.l.b16 %v31
  %v58 = vunpack.c.l.b16 %v32
  %v59 = vpack.c.b16 %v58, %v57
  %vm61 = vcmask 130048
  %v63 = vsel %vm61, %v51, 0
  %v66 = vsel %vm61, %v52, 0
  %v69 = vsel %vm61, %v53, 0
  %v72 = vsel %vm61, %v54, 0
  %74 = vmatprep.subr.bf16.mxu0 0
  %75 = vmatpush1.bf16.msra.mxu0 %v59
  %76 = vmatprep.subr.bf16.mxu0 0
  %77 = vmatpush1.bf16.msra.mxu0 0
  %78 = vmatprep.subr.bf16.mxu0 0
  %79 = vmatpush1.bf16.msra.mxu0 0
  %80 = vmatprep.subr.bf16.mxu0 0
  %81 = vmatpush1.bf16.msra.mxu0 0
  %82 = vmatprep.subr.bf16.mxu0 0
  %83 = vmatpush1.bf16.msra.mxu0 0
  %84 = vmatprep.subr.bf16.mxu0 0
  %85 = vmatpush1.bf16.msra.mxu0 0
  %86 = vmatprep.subr.bf16.mxu0 0
  %87 = vmatpush1.bf16.msra.mxu0 0
  %88 = vmatprep.subr.bf16.mxu0 0
  %89 = vmatpush1.bf16.msra.mxu0 0
  %90 = vmatprep.subr.bf16.mxu0 0
  %91 = vmatpush1.bf16.msra.mxu0 0
  %92 = vmatprep.subr.bf16.mxu0 0
  %93 = vmatpush1.bf16.msra.mxu0 0
  %94 = vmatprep.subr.bf16.mxu0 0
  %95 = vmatpush1.bf16.msra.mxu0 0
  %96 = vmatprep.subr.bf16.mxu0 0
  %97 = vmatpush1.bf16.msra.mxu0 0
  %98 = vmatprep.subr.bf16.mxu0 0
  %99 = vmatpush1.bf16.msra.mxu0 0
  %100 = vmatprep.subr.bf16.mxu0 0
  %101 = vmatpush1.bf16.msra.mxu0 0
  %102 = vmatprep.subr.bf16.mxu0 0
  %103 = vmatpush1.bf16.msra.mxu0 0
  %104 = vmatprep.subr.bf16.mxu0 0
  %105 = vmatpush1.bf16.msra.mxu0 0
  %106 = vmatprep.mubr.bf16.mxu0 0
  %107 = vmatmul.mubr.bf16.gmra.mrb[0].mxu0 %v63
  %v108 = vpop.f32.mrb[0].mxu0
  %v109 = vadd.f32 0.0, %v108
  %v110 = vpop.f32.mrb[0].mxu0
  %v111 = vpop.f32.mrb[0].mxu0
  %v112 = vadd.f32 0.0, %v111
  %v113 = vpop.f32.mrb[0].mxu0
  %114 = vmatprep.mubr.bf16.mxu0 0
  %115 = vmatmul.mubr.bf16.gmra.mrb[0].mxu0 %v66
  %v116 = vpop.f32.mrb[0].mxu0
  %v117 = vadd.f32 0.0, %v116
  %v118 = vpop.f32.mrb[0].mxu0
  %v119 = vpop.f32.mrb[0].mxu0
  %v120 = vadd.f32 0.0, %v119
  %v121 = vpop.f32.mrb[0].mxu0
  %122 = vmatprep.mubr.bf16.mxu0 0
  %123 = vmatmul.mubr.bf16.gmra.mrb[0].mxu0 %v69
  %v124 = vpop.f32.mrb[0].mxu0
  %v125 = vadd.f32 0.0, %v124
  %v126 = vpop.f32.mrb[0].mxu0
  %v127 = vpop.f32.mrb[0].mxu0
  %v128 = vadd.f32 0.0, %v127
  %v129 = vpop.f32.mrb[0].mxu0
  %130 = vmatprep.mubr.bf16.mxu0 0
  %131 = vmatmul.mubr.bf16.gmra.mrb[0].mxu0 %v72
  %v132 = vpop.f32.mrb[0].mxu0
  %v133 = vadd.f32 0.0, %v132
  %v134 = vpop.f32.mrb[0].mxu0
  %v135 = vpop.f32.mrb[0].mxu0
  %v136 = vadd.f32 0.0, %v135
  %v137 = vpop.f32.mrb[0].mxu0
  %138 = vdwg.mxu0
  %v147 = vunpack.c.l.b16 %v23
  %v148 = vunpack.c.l.b16 %v24
  %v149 = vunpack.c.l.b16 %v25
  %v150 = vunpack.c.l.b16 %v26
  %v151 = vunpack.c.l.b16 %v27
  %v152 = vunpack.c.l.b16 %v28
  %v153 = vunpack.c.l.b16 %v29
  %v154 = vunpack.c.l.b16 %v30
  %v155 = vpack.c.b16 %v148, %v147
  %v156 = vpack.c.b16 %v150, %v149
  %v157 = vpack.c.b16 %v152, %v151
  %v158 = vpack.c.b16 %v154, %v153
  %v161 = vunpack.c.l.b16 %v33
  %v162 = vunpack.c.l.b16 %v34
  %v163 = vpack.c.b16 %v162, %v161
  %v166 = vsel %vm61, %v155, 0
  %v169 = vsel %vm61, %v156, 0
  %v172 = vsel %vm61, %v157, 0
  %v175 = vsel %vm61, %v158, 0
  %177 = vmatprep.subr.bf16.mxu0 0
  %178 = vmatpush1.bf16.msra.mxu0 %v163
  %179 = vmatprep.subr.bf16.mxu0 0
  %180 = vmatpush1.bf16.msra.mxu0 0
  %181 = vmatprep.subr.bf16.mxu0 0
  %182 = vmatpush1.bf16.msra.mxu0 0
  %183 = vmatprep.subr.bf16.mxu0 0
  %184 = vmatpush1.bf16.msra.mxu0 0
  %185 = vmatprep.subr.bf16.mxu0 0
  %186 = vmatpush1.bf16.msra.mxu0 0
  %187 = vmatprep.subr.bf16.mxu0 0
  %188 = vmatpush1.bf16.msra.mxu0 0
  %189 = vmatprep.subr.bf16.mxu0 0
  %190 = vmatpush1.bf16.msra.mxu0 0
  %191 = vmatprep.subr.bf16.mxu0 0
  %192 = vmatpush1.bf16.msra.mxu0 0
  %193 = vmatprep.subr.bf16.mxu0 0
  %194 = vmatpush1.bf16.msra.mxu0 0
  %195 = vmatprep.subr.bf16.mxu0 0
  %196 = vmatpush1.bf16.msra.mxu0 0
  %197 = vmatprep.subr.bf16.mxu0 0
  %198 = vmatpush1.bf16.msra.mxu0 0
  %199 = vmatprep.subr.bf16.mxu0 0
  %200 = vmatpush1.bf16.msra.mxu0 0
  %201 = vmatprep.subr.bf16.mxu0 0
  %202 = vmatpush1.bf16.msra.mxu0 0
  %203 = vmatprep.subr.bf16.mxu0 0
  %204 = vmatpush1.bf16.msra.mxu0 0
  %205 = vmatprep.subr.bf16.mxu0 0
  %206 = vmatpush1.bf16.msra.mxu0 0
  %207 = vmatprep.subr.bf16.mxu0 0
  %208 = vmatpush1.bf16.msra.mxu0 0
  %209 = vmatprep.mubr.bf16.mxu0 0
  %210 = vmatmul.mubr.bf16.gmra.mrb[0].mxu0 %v166
  %v211 = vpop.f32.mrb[0].mxu0
  %v212 = vadd.f32 0.0, %v211
  %v213 = vpop.f32.mrb[0].mxu0
  %v214 = vpop.f32.mrb[0].mxu0
  %v215 = vadd.f32 0.0, %v214
  %v216 = vpop.f32.mrb[0].mxu0
  %217 = vmatprep.mubr.bf16.mxu0 0
  %218 = vmatmul.mubr.bf16.gmra.mrb[0].mxu0 %v169
  %v219 = vpop.f32.mrb[0].mxu0
  %v220 = vadd.f32 0.0, %v219
  %v221 = vpop.f32.mrb[0].mxu0
  %v222 = vpop.f32.mrb[0].mxu0
  %v223 = vadd.f32 0.0, %v222
  %v224 = vpop.f32.mrb[0].mxu0
  %225 = vmatprep.mubr.bf16.mxu0 0
  %226 = vmatmul.mubr.bf16.gmra.mrb[0].mxu0 %v172
  %v227 = vpop.f32.mrb[0].mxu0
  %v228 = vadd.f32 0.0, %v227
  %v229 = vpop.f32.mrb[0].mxu0
  %v230 = vpop.f32.mrb[0].mxu0
  %v231 = vadd.f32 0.0, %v230
  %v232 = vpop.f32.mrb[0].mxu0
  %233 = vmatprep.mubr.bf16.mxu0 0
  %234 = vmatmul.mubr.bf16.gmra.mrb[0].mxu0 %v175
  %v235 = vpop.f32.mrb[0].mxu0
  %v236 = vadd.f32 0.0, %v235
  %v237 = vpop.f32.mrb[0].mxu0
  %v238 = vpop.f32.mrb[0].mxu0
  %v239 = vadd.f32 0.0, %v238
  %v240 = vpop.f32.mrb[0].mxu0
  %241 = vdwg.mxu0
  %v242 = vpack.c.bf16 %v112, %v109
  %v243 = vpack.c.bf16 %v120, %v117
  %v244 = vpack.c.bf16 %v128, %v125
  %v245 = vpack.c.bf16 %v136, %v133
  %v246 = vpack.c.bf16 %v215, %v212
  %v247 = vpack.c.bf16 %v223, %v220
  %v248 = vpack.c.bf16 %v231, %v228
  %v249 = vpack.c.bf16 %v239, %v236
  %v250 = vld [vmem:[%s1] sm:$0xf]
  %v251 = vld [vmem:[%s1 + $0x4] sm:$0xf]
  %v252 = vld [vmem:[%s1 + $0x8] sm:$0xf]
  %v253 = vld [vmem:[%s1 + $0xc] sm:$0xf]
  %v254 = vld [vmem:[%s1 + $0x10] sm:$0xf]
  %v255 = vld [vmem:[%s1 + $0x14] sm:$0xf]
  %v256 = vld [vmem:[%s1 + $0x18] sm:$0xf]
  %v257 = vld [vmem:[%s1 + $0x1c] sm:$0xf]
  %v258 = vld [vmem:[%s1 + $0x20] sm:$0xf]
  %v259 = vld [vmem:[%s1 + $0x24] sm:$0xf]
  %v260 = vld [vmem:[%s1 + $0x28] sm:$0xf]
  %v261 = vld [vmem:[%s1 + $0x2c] sm:$0xf]
  %v262 = vld [vmem:[%s1 + $0x30] sm:$0xf]
  %v263 = vld [vmem:[%s1 + $0x34] sm:$0xf]
  %v264 = vld [vmem:[%s1 + $0x38] sm:$0xf]
  %v265 = vld [vmem:[%s1 + $0x3c] sm:$0xf]
  %v268 = vunpack.c.l.b16 %v250
  %v269 = vunpack.c.l.b16 %v251
  %v270 = vpack.c.b16 %v269, %v268
  %v272 = vsel %vm61, %v270, 0
  %274 = vmatprep.subr.bf16.mxu0 0
  %275 = vmatpush1.bf16.msra.mxu0 %v242
  %276 = vmatprep.subr.bf16.mxu0 0
  %277 = vmatpush1.bf16.msra.mxu0 0
  %278 = vmatprep.subr.bf16.mxu0 0
  %279 = vmatpush1.bf16.msra.mxu0 0
  %280 = vmatprep.subr.bf16.mxu0 0
  %281 = vmatpush1.bf16.msra.mxu0 0
  %282 = vmatprep.subr.bf16.mxu0 0
  %283 = vmatpush1.bf16.msra.mxu0 0
  %284 = vmatprep.subr.bf16.mxu0 0
  %285 = vmatpush1.bf16.msra.mxu0 0
  %286 = vmatprep.subr.bf16.mxu0 0
  %287 = vmatpush1.bf16.msra.mxu0 0
  %288 = vmatprep.subr.bf16.mxu0 0
  %289 = vmatpush1.bf16.msra.mxu0 0
  %290 = vmatprep.subr.bf16.mxu0 0
  %291 = vmatpush1.bf16.msra.mxu0 0
  %292 = vmatprep.subr.bf16.mxu0 0
  %293 = vmatpush1.bf16.msra.mxu0 0
  %294 = vmatprep.subr.bf16.mxu0 0
  %295 = vmatpush1.bf16.msra.mxu0 0
  %296 = vmatprep.subr.bf16.mxu0 0
  %297 = vmatpush1.bf16.msra.mxu0 0
  %298 = vmatprep.subr.bf16.mxu0 0
  %299 = vmatpush1.bf16.msra.mxu0 0
  %300 = vmatprep.subr.bf16.mxu0 0
  %301 = vmatpush1.bf16.msra.mxu0 0
  %302 = vmatprep.subr.bf16.mxu0 0
  %303 = vmatpush1.bf16.msra.mxu0 0
  %304 = vmatprep.subr.bf16.mxu0 0
  %305 = vmatpush1.bf16.msra.mxu0 0
  %306 = vmatprep.mubr.bf16.mxu0 0
  %307 = vmatmul.mubr.bf16.gmra.mrb[0].mxu0 %v272
  %v308 = vpop.f32.mrb[0].mxu0
  %v309 = vadd.f32 0.0, %v308
  %v310 = vpop.f32.mrb[0].mxu0
  %v311 = vpop.f32.mrb[0].mxu0
  %v312 = vadd.f32 0.0, %v311
  %v313 = vpop.f32.mrb[0].mxu0
  %314 = vdwg.mxu0
  %v317 = vunpack.c.l.b16 %v252
  %v318 = vunpack.c.l.b16 %v253
  %v319 = vpack.c.b16 %v318, %v317
  %v321 = vsel %vm61, %v319, 0
  %323 = vmatprep.subr.bf16.mxu0 0
  %324 = vmatpush1.bf16.msra.mxu0 %v243
  %325 = vmatprep.subr.bf16.mxu0 0
  %326 = vmatpush1.bf16.msra.mxu0 0
  %327 = vmatprep.subr.bf16.mxu0 0
  %328 = vmatpush1.bf16.msra.mxu0 0
  %329 = vmatprep.subr.bf16.mxu0 0
  %330 = vmatpush1.bf16.msra.mxu0 0
  %331 = vmatprep.subr.bf16.mxu0 0
  %332 = vmatpush1.bf16.msra.mxu0 0
  %333 = vmatprep.subr.bf16.mxu0 0
  %334 = vmatpush1.bf16.msra.mxu0 0
  %335 = vmatprep.subr.bf16.mxu0 0
  %336 = vmatpush1.bf16.msra.mxu0 0
  %337 = vmatprep.subr.bf16.mxu0 0
  %338 = vmatpush1.bf16.msra.mxu0 0
  %339 = vmatprep.subr.bf16.mxu0 0
  %340 = vmatpush1.bf16.msra.mxu0 0
  %341 = vmatprep.subr.bf16.mxu0 0
  %342 = vmatpush1.bf16.msra.mxu0 0
  %343 = vmatprep.subr.bf16.mxu0 0
  %344 = vmatpush1.bf16.msra.mxu0 0
  %345 = vmatprep.subr.bf16.mxu0 0
  %346 = vmatpush1.bf16.msra.mxu0 0
  %347 = vmatprep.subr.bf16.mxu0 0
  %348 = vmatpush1.bf16.msra.mxu0 0
  %349 = vmatprep.subr.bf16.mxu0 0
  %350 = vmatpush1.bf16.msra.mxu0 0
  %351 = vmatprep.subr.bf16.mxu0 0
  %352 = vmatpush1.bf16.msra.mxu0 0
  %353 = vmatprep.subr.bf16.mxu0 0
  %354 = vmatpush1.bf16.msra.mxu0 0
  %355 = vmatprep.mubr.bf16.mxu0 0
  %356 = vmatmul.mubr.bf16.gmra.mrb[0].mxu0 %v321
  %v357 = vpop.f32.mrb[0].mxu0
  %v358 = vadd.f32 0.0, %v357
  %v359 = vpop.f32.mrb[0].mxu0
  %v360 = vpop.f32.mrb[0].mxu0
  %v361 = vadd.f32 0.0, %v360
  %v362 = vpop.f32.mrb[0].mxu0
  %363 = vdwg.mxu0
  %v366 = vunpack.c.l.b16 %v254
  %v367 = vunpack.c.l.b16 %v255
  %v368 = vpack.c.b16 %v367, %v366
  %v370 = vsel %vm61, %v368, 0
  %372 = vmatprep.subr.bf16.mxu0 0
  %373 = vmatpush1.bf16.msra.mxu0 %v244
  %374 = vmatprep.subr.bf16.mxu0 0
  %375 = vmatpush1.bf16.msra.mxu0 0
  %376 = vmatprep.subr.bf16.mxu0 0
  %377 = vmatpush1.bf16.msra.mxu0 0
  %378 = vmatprep.subr.bf16.mxu0 0
  %379 = vmatpush1.bf16.msra.mxu0 0
  %380 = vmatprep.subr.bf16.mxu0 0
  %381 = vmatpush1.bf16.msra.mxu0 0
  %382 = vmatprep.subr.bf16.mxu0 0
  %383 = vmatpush1.bf16.msra.mxu0 0
  %384 = vmatprep.subr.bf16.mxu0 0
  %385 = vmatpush1.bf16.msra.mxu0 0
  %386 = vmatprep.subr.bf16.mxu0 0
  %387 = vmatpush1.bf16.msra.mxu0 0
  %388 = vmatprep.subr.bf16.mxu0 0
  %389 = vmatpush1.bf16.msra.mxu0 0
  %390 = vmatprep.subr.bf16.mxu0 0
  %391 = vmatpush1.bf16.msra.mxu0 0
  %392 = vmatprep.subr.bf16.mxu0 0
  %393 = vmatpush1.bf16.msra.mxu0 0
  %394 = vmatprep.subr.bf16.mxu0 0
  %395 = vmatpush1.bf16.msra.mxu0 0
  %396 = vmatprep.subr.bf16.mxu0 0
  %397 = vmatpush1.bf16.msra.mxu0 0
  %398 = vmatprep.subr.bf16.mxu0 0
  %399 = vmatpush1.bf16.msra.mxu0 0
  %400 = vmatprep.subr.bf16.mxu0 0
  %401 = vmatpush1.bf16.msra.mxu0 0
  %402 = vmatprep.subr.bf16.mxu0 0
  %403 = vmatpush1.bf16.msra.mxu0 0
  %404 = vmatprep.mubr.bf16.mxu0 0
  %405 = vmatmul.mubr.bf16.gmra.mrb[0].mxu0 %v370
  %v406 = vpop.f32.mrb[0].mxu0
  %v407 = vadd.f32 0.0, %v406
  %v408 = vpop.f32.mrb[0].mxu0
  %v409 = vpop.f32.mrb[0].mxu0
  %v410 = vadd.f32 0.0, %v409
  %v411 = vpop.f32.mrb[0].mxu0
  %412 = vdwg.mxu0
  %v415 = vunpack.c.l.b16 %v256
  %v416 = vunpack.c.l.b16 %v257
  %v417 = vpack.c.b16 %v416, %v415
  %v419 = vsel %vm61, %v417, 0
  %421 = vmatprep.subr.bf16.mxu0 0
  %422 = vmatpush1.bf16.msra.mxu0 %v245
  %423 = vmatprep.subr.bf16.mxu0 0
  %424 = vmatpush1.bf16.msra.mxu0 0
  %425 = vmatprep.subr.bf16.mxu0 0
  %426 = vmatpush1.bf16.msra.mxu0 0
  %427 = vmatprep.subr.bf16.mxu0 0
  %428 = vmatpush1.bf16.msra.mxu0 0
  %429 = vmatprep.subr.bf16.mxu0 0
  %430 = vmatpush1.bf16.msra.mxu0 0
  %431 = vmatprep.subr.bf16.mxu0 0
  %432 = vmatpush1.bf16.msra.mxu0 0
  %433 = vmatprep.subr.bf16.mxu0 0
  %434 = vmatpush1.bf16.msra.mxu0 0
  %435 = vmatprep.subr.bf16.mxu0 0
  %436 = vmatpush1.bf16.msra.mxu0 0
  %437 = vmatprep.subr.bf16.mxu0 0
  %438 = vmatpush1.bf16.msra.mxu0 0
  %439 = vmatprep.subr.bf16.mxu0 0
  %440 = vmatpush1.bf16.msra.mxu0 0
  %441 = vmatprep.subr.bf16.mxu0 0
  %442 = vmatpush1.bf16.msra.mxu0 0
  %443 = vmatprep.subr.bf16.mxu0 0
  %444 = vmatpush1.bf16.msra.mxu0 0
  %445 = vmatprep.subr.bf16.mxu0 0
  %446 = vmatpush1.bf16.msra.mxu0 0
  %447 = vmatprep.subr.bf16.mxu0 0
  %448 = vmatpush1.bf16.msra.mxu0 0
  %449 = vmatprep.subr.bf16.mxu0 0
  %450 = vmatpush1.bf16.msra.mxu0 0
  %451 = vmatprep.subr.bf16.mxu0 0
  %452 = vmatpush1.bf16.msra.mxu0 0
  %453 = vmatprep.mubr.bf16.mxu0 0
  %454 = vmatmul.mubr.bf16.gmra.mrb[0].mxu0 %v419
  %v455 = vpop.f32.mrb[0].mxu0
  %v456 = vadd.f32 0.0, %v455
  %v457 = vpop.f32.mrb[0].mxu0
  %v458 = vpop.f32.mrb[0].mxu0
  %v459 = vadd.f32 0.0, %v458
  %v460 = vpop.f32.mrb[0].mxu0
  %461 = vdwg.mxu0
  %v464 = vunpack.c.l.b16 %v258
  %v465 = vunpack.c.l.b16 %v259
  %v466 = vpack.c.b16 %v465, %v464
  %v468 = vsel %vm61, %v466, 0
  %470 = vmatprep.subr.bf16.mxu0 0
  %471 = vmatpush1.bf16.msra.mxu0 %v246
  %472 = vmatprep.subr.bf16.mxu0 0
  %473 = vmatpush1.bf16.msra.mxu0 0
  %474 = vmatprep.subr.bf16.mxu0 0
  %475 = vmatpush1.bf16.msra.mxu0 0
  %476 = vmatprep.subr.bf16.mxu0 0
  %477 = vmatpush1.bf16.msra.mxu0 0
  %478 = vmatprep.subr.bf16.mxu0 0
  %479 = vmatpush1.bf16.msra.mxu0 0
  %480 = vmatprep.subr.bf16.mxu0 0
  %481 = vmatpush1.bf16.msra.mxu0 0
  %482 = vmatprep.subr.bf16.mxu0 0
  %483 = vmatpush1.bf16.msra.mxu0 0
  %484 = vmatprep.subr.bf16.mxu0 0
  %485 = vmatpush1.bf16.msra.mxu0 0
  %486 = vmatprep.subr.bf16.mxu0 0
  %487 = vmatpush1.bf16.msra.mxu0 0
  %488 = vmatprep.subr.bf16.mxu0 0
  %489 = vmatpush1.bf16.msra.mxu0 0
  %490 = vmatprep.subr.bf16.mxu0 0
  %491 = vmatpush1.bf16.msra.mxu0 0
  %492 = vmatprep.subr.bf16.mxu0 0
  %493 = vmatpush1.bf16.msra.mxu0 0
  %494 = vmatprep.subr.bf16.mxu0 0
  %495 = vmatpush1.bf16.msra.mxu0 0
  %496 = vmatprep.subr.bf16.mxu0 0
  %497 = vmatpush1.bf16.msra.mxu0 0
  %498 = vmatprep.subr.bf16.mxu0 0
  %499 = vmatpush1.bf16.msra.mxu0 0
  %500 = vmatprep.subr.bf16.mxu0 0
  %501 = vmatpush1.bf16.msra.mxu0 0
  %502 = vmatprep.mubr.bf16.mxu0 0
  %503 = vmatmul.mubr.bf16.gmra.mrb[0].mxu0 %v468
  %v504 = vpop.f32.mrb[0].mxu0
  %v505 = vadd.f32 0.0, %v504
  %v506 = vpop.f32.mrb[0].mxu0
  %v507 = vpop.f32.mrb[0].mxu0
  %v508 = vadd.f32 0.0, %v507
  %v509 = vpop.f32.mrb[0].mxu0
  %510 = vdwg.mxu0
  %v513 = vunpack.c.l.b16 %v260
  %v514 = vunpack.c.l.b16 %v261
  %v515 = vpack.c.b16 %v514, %v513
  %v517 = vsel %vm61, %v515, 0
  %519 = vmatprep.subr.bf16.mxu0 0
  %520 = vmatpush1.bf16.msra.mxu0 %v247
  %521 = vmatprep.subr.bf16.mxu0 0
  %522 = vmatpush1.bf16.msra.mxu0 0
  %523 = vmatprep.subr.bf16.mxu0 0
  %524 = vmatpush1.bf16.msra.mxu0 0
  %525 = vmatprep.subr.bf16.mxu0 0
  %526 = vmatpush1.bf16.msra.mxu0 0
  %527 = vmatprep.subr.bf16.mxu0 0
  %528 = vmatpush1.bf16.msra.mxu0 0
  %529 = vmatprep.subr.bf16.mxu0 0
  %530 = vmatpush1.bf16.msra.mxu0 0
  %531 = vmatprep.subr.bf16.mxu0 0
  %532 = vmatpush1.bf16.msra.mxu0 0
  %533 = vmatprep.subr.bf16.mxu0 0
  %534 = vmatpush1.bf16.msra.mxu0 0
  %535 = vmatprep.subr.bf16.mxu0 0
  %536 = vmatpush1.bf16.msra.mxu0 0
  %537 = vmatprep.subr.bf16.mxu0 0
  %538 = vmatpush1.bf16.msra.mxu0 0
  %539 = vmatprep.subr.bf16.mxu0 0
  %540 = vmatpush1.bf16.msra.mxu0 0
  %541 = vmatprep.subr.bf16.mxu0 0
  %542 = vmatpush1.bf16.msra.mxu0 0
  %543 = vmatprep.subr.bf16.mxu0 0
  %544 = vmatpush1.bf16.msra.mxu0 0
  %545 = vmatprep.subr.bf16.mxu0 0
  %546 = vmatpush1.bf16.msra.mxu0 0
  %547 = vmatprep.subr.bf16.mxu0 0
  %548 = vmatpush1.bf16.msra.mxu0 0
  %549 = vmatprep.subr.bf16.mxu0 0
  %550 = vmatpush1.bf16.msra.mxu0 0
  %551 = vmatprep.mubr.bf16.mxu0 0
  %552 = vmatmul.mubr.bf16.gmra.mrb[0].mxu0 %v517
  %v553 = vpop.f32.mrb[0].mxu0
  %v554 = vadd.f32 0.0, %v553
  %v555 = vpop.f32.mrb[0].mxu0
  %v556 = vpop.f32.mrb[0].mxu0
  %v557 = vadd.f32 0.0, %v556
  %v558 = vpop.f32.mrb[0].mxu0
  %559 = vdwg.mxu0
  %v562 = vunpack.c.l.b16 %v262
  %v563 = vunpack.c.l.b16 %v263
  %v564 = vpack.c.b16 %v563, %v562
  %v566 = vsel %vm61, %v564, 0
  %568 = vmatprep.subr.bf16.mxu0 0
  %569 = vmatpush1.bf16.msra.mxu0 %v248
  %570 = vmatprep.subr.bf16.mxu0 0
  %571 = vmatpush1.bf16.msra.mxu0 0
  %572 = vmatprep.subr.bf16.mxu0 0
  %573 = vmatpush1.bf16.msra.mxu0 0
  %574 = vmatprep.subr.bf16.mxu0 0
  %575 = vmatpush1.bf16.msra.mxu0 0
  %576 = vmatprep.subr.bf16.mxu0 0
  %577 = vmatpush1.bf16.msra.mxu0 0
  %578 = vmatprep.subr.bf16.mxu0 0
  %579 = vmatpush1.bf16.msra.mxu0 0
  %580 = vmatprep.subr.bf16.mxu0 0
  %581 = vmatpush1.bf16.msra.mxu0 0
  %582 = vmatprep.subr.bf16.mxu0 0
  %583 = vmatpush1.bf16.msra.mxu0 0
  %584 = vmatprep.subr.bf16.mxu0 0
  %585 = vmatpush1.bf16.msra.mxu0 0
  %586 = vmatprep.subr.bf16.mxu0 0
  %587 = vmatpush1.bf16.msra.mxu0 0
  %588 = vmatprep.subr.bf16.mxu0 0
  %589 = vmatpush1.bf16.msra.mxu0 0
  %590 = vmatprep.subr.bf16.mxu0 0
  %591 = vmatpush1.bf16.msra.mxu0 0
  %592 = vmatprep.subr.bf16.mxu0 0
  %593 = vmatpush1.bf16.msra.mxu0 0
  %594 = vmatprep.subr.bf16.mxu0 0
  %595 = vmatpush1.bf16.msra.mxu0 0
  %596 = vmatprep.subr.bf16.mxu0 0
  %597 = vmatpush1.bf16.msra.mxu0 0
  %598 = vmatprep.subr.bf16.mxu0 0
  %599 = vmatpush1.bf16.msra.mxu0 0
  %600 = vmatprep.mubr.bf16.mxu0 0
  %601 = vmatmul.mubr.bf16.gmra.mrb[0].mxu0 %v566
  %v602 = vpop.f32.mrb[0].mxu0
  %v603 = vadd.f32 0.0, %v602
  %v604 = vpop.f32.mrb[0].mxu0
  %v605 = vpop.f32.mrb[0].mxu0
  %v606 = vadd.f32 0.0, %v605
  %v607 = vpop.f32.mrb[0].mxu0
  %608 = vdwg.mxu0
  %v611 = vunpack.c.l.b16 %v264
  %v612 = vunpack.c.l.b16 %v265
  %v613 = vpack.c.b16 %v612, %v611
  %v615 = vsel %vm61, %v613, 0
  %617 = vmatprep.subr.bf16.mxu0 0
  %618 = vmatpush1.bf16.msra.mxu0 %v249
  %619 = vmatprep.subr.bf16.mxu0 0
  %620 = vmatpush1.bf16.msra.mxu0 0
  %621 = vmatprep.subr.bf16.mxu0 0
  %622 = vmatpush1.bf16.msra.mxu0 0
  %623 = vmatprep.subr.bf16.mxu0 0
  %624 = vmatpush1.bf16.msra.mxu0 0
  %625 = vmatprep.subr.bf16.mxu0 0
  %626 = vmatpush1.bf16.msra.mxu0 0
  %627 = vmatprep.subr.bf16.mxu0 0
  %628 = vmatpush1.bf16.msra.mxu0 0
  %629 = vmatprep.subr.bf16.mxu0 0
  %630 = vmatpush1.bf16.msra.mxu0 0
  %631 = vmatprep.subr.bf16.mxu0 0
  %632 = vmatpush1.bf16.msra.mxu0 0
  %633 = vmatprep.subr.bf16.mxu0 0
  %634 = vmatpush1.bf16.msra.mxu0 0
  %635 = vmatprep.subr.bf16.mxu0 0
  %636 = vmatpush1.bf16.msra.mxu0 0
  %637 = vmatprep.subr.bf16.mxu0 0
  %638 = vmatpush1.bf16.msra.mxu0 0
  %639 = vmatprep.subr.bf16.mxu0 0
  %640 = vmatpush1.bf16.msra.mxu0 0
  %641 = vmatprep.subr.bf16.mxu0 0
  %642 = vmatpush1.bf16.msra.mxu0 0
  %643 = vmatprep.subr.bf16.mxu0 0
  %644 = vmatpush1.bf16.msra.mxu0 0
  %645 = vmatprep.subr.bf16.mxu0 0
  %646 = vmatpush1.bf16.msra.mxu0 0
  %647 = vmatprep.subr.bf16.mxu0 0
  %648 = vmatpush1.bf16.msra.mxu0 0
  %649 = vmatprep.mubr.bf16.mxu0 0
  %650 = vmatmul.mubr.bf16.gmra.mrb[0].mxu0 %v615
  %v651 = vpop.f32.mrb[0].mxu0
  %v652 = vadd.f32 0.0, %v651
  %v653 = vpop.f32.mrb[0].mxu0
  %v654 = vpop.f32.mrb[0].mxu0
  %v655 = vadd.f32 0.0, %v654
  %v656 = vpop.f32.mrb[0].mxu0
  %657 = vdwg.mxu0
  %658 = vst.msk [vmem:[%s3] sm:$0xff] %vm61, %v309
  %659 = vst.msk [vmem:[%s3 + $0x8] sm:$0xff] %vm61, %v312
  %660 = vst.msk [vmem:[%s3 + $0x10] sm:$0xff] %vm61, %v358
  %661 = vst.msk [vmem:[%s3 + $0x18] sm:$0xff] %vm61, %v361
  %662 = vst.msk [vmem:[%s3 + $0x20] sm:$0xff] %vm61, %v407
  %663 = vst.msk [vmem:[%s3 + $0x28] sm:$0xff] %vm61, %v410
  %664 = vst.msk [vmem:[%s3 + $0x30] sm:$0xff] %vm61, %v456
  %665 = vst.msk [vmem:[%s3 + $0x38] sm:$0xff] %vm61, %v459
  %666 = vst.msk [vmem:[%s3 + $0x40] sm:$0xff] %vm61, %v505
  %667 = vst.msk [vmem:[%s3 + $0x48] sm:$0xff] %vm61, %v508
  %668 = vst.msk [vmem:[%s3 + $0x50] sm:$0xff] %vm61, %v554
  %669 = vst.msk [vmem:[%s3 + $0x58] sm:$0xff] %vm61, %v557
  %670 = vst.msk [vmem:[%s3 + $0x60] sm:$0xff] %vm61, %v603
  %671 = vst.msk [vmem:[%s3 + $0x68] sm:$0xff] %vm61, %v606
  %672 = vst.msk [vmem:[%s3 + $0x70] sm:$0xff] %vm61, %v652
  %673 = vst.msk [vmem:[%s3 + $0x78] sm:$0xff] %vm61, %v655
  // Predicated region
  $region14: #{tpu_custom_call.1} parent=0 // pred_check
    _
  $region15: #{tpu_custom_call.1} parent=0 // pred_check_branch
    %675 = sbr.rel (0) target = $region17
  $region16: #{tpu_custom_call.1} parent=0 // pred_region
    _
  $region17: #{tpu_custom_call.1} parent=0 // pred_fallthru
    _
  // Predicated region
  $region18: #{tpu_custom_call.1} parent=0 // pred_check
    _
  $region19: #{tpu_custom_call.1} parent=0 // pred_check_branch
    %677 = sbr.rel (0) target = $region21
  $region20: #{tpu_custom_call.1} parent=0 // pred_region
    _
  $region21: #{tpu_custom_call.1} parent=0 // pred_fallthru
    _

</llo_original>
